<compile_context>
chip_gen: v6e
topology: v6e:2x2x1
jax: 0.10.0
libtpu: 0.0.40
codegen_flags: <defaults>
</compile_context>

<pallas_src>
import functools

import jax
import jax.numpy as jnp
from jax import lax
from jax.experimental import pallas as pl
from jax.experimental.pallas import tpu as pltpu


# ----------------------------------------------------------------------------
# Fused kernel: batched input projection + sequential LSTM recurrence
# ----------------------------------------------------------------------------
def _fused_lstm_kernel(x_ref, wih_ref, b_ref, whh_ref, out_ref, g_ref, *,
                       seq_len, hidden_size):
    """x_ref:(T,D)  wih_ref:(D,4H)  b_ref:(1,4H)  whh_ref:(H,4H)  out_ref:(1,H)
    g_ref: (T,4H) VMEM scratch holding the precomputed gate pre-activations."""
    H = hidden_size

    # ---- Phase 1 (in-kernel): one batched MXU matmul for all timesteps ------
    #   G = X @ W_ih^T + (b_ih + b_hh)
    g_ref[...] = (
        jnp.dot(x_ref[...], wih_ref[...], preferred_element_type=jnp.float32)
        + b_ref[...]
    )

    # ---- Phase 2: strictly sequential recurrence over the T precomputed rows -
    whh = whh_ref[...]                                   # (H, 4H), loaded once

    def step(t, carry):
        h, c = carry                                     # (1, H), (1, H)
        gates = (g_ref[pl.ds(t, 1), :]
                 + jnp.dot(h, whh, preferred_element_type=jnp.float32))  # (1, 4H)
        # One wide sigmoid pass covers in/forget/out gates (cell slot discarded).
        sig = jax.nn.sigmoid(gates)
        ingate     = sig[:, 0 * H:1 * H]
        forgetgate = sig[:, 1 * H:2 * H]
        outgate    = sig[:, 3 * H:4 * H]
        cellgate   = jnp.tanh(gates[:, 2 * H:3 * H])
        c_new = forgetgate * c + ingate * cellgate
        h_new = outgate * jnp.tanh(c_new)
        return h_new, c_new

    h0 = jnp.zeros((1, H), jnp.float32)
    c0 = jnp.zeros((1, H), jnp.float32)
    h_last, _ = lax.fori_loop(0, seq_len, step, (h0, c0),
                              unroll=max(1, min(8, seq_len)))
    out_ref[...] = h_last.astype(out_ref.dtype)


# ----------------------------------------------------------------------------
# Wrapper
# ----------------------------------------------------------------------------
def rnn_for_weight(seq, w_ih, b_ih, w_hh, b_hh):
    """seq: (T, 1, D) float32. Returns (H,) — last LSTM hidden state, squeezed."""
    T, one, D = seq.shape
    assert one == 1
    four_h = w_ih.shape[0]
    H = four_h // 4

    x = jnp.asarray(seq, jnp.float32).reshape(T, D)            # (T, D)
    wih_t = jnp.asarray(w_ih, jnp.float32).T                    # (D, 4H)
    whh_t = jnp.asarray(w_hh, jnp.float32).T                    # (H, 4H)
    b = (jnp.asarray(b_ih, jnp.float32)
         + jnp.asarray(b_hh, jnp.float32)).reshape(1, four_h)   # fused bias

    # Rough resident VMEM estimate (f32, inputs ~double-buffered, + gate scratch).
    est_bytes = 4 * (2 * (T * D + D * four_h + four_h + H * four_h + H)
                     + T * four_h)
    vmem_limit = None
    if est_bytes > (12 << 20):          # raise scoped default only when needed
        vmem_limit = min(2 * est_bytes, 60 << 20)   # stay under v7x's 64 MiB
    # TODO(synk): for parameter vectors / sequences too large for VMEM, chunk the
    # projection over D and the recurrence over T (h/c carried in scratch); the
    # fused kernel below assumes the whole working set fits VMEM, which holds at
    # this module's intended sizes.

    kernel = functools.partial(_fused_lstm_kernel, seq_len=T, hidden_size=H)
    out = pl.pallas_call(
        kernel,
        out_shape=jax.ShapeDtypeStruct((1, H), jnp.float32),
        grid_spec=pltpu.PrefetchScalarGridSpec(
            num_scalar_prefetch=0,
            grid=(1,),
            in_specs=[
                pl.BlockSpec((T, D), lambda i: (0, 0)),          # all input rows
                pl.BlockSpec((D, four_h), lambda i: (0, 0)),     # W_ih^T
                pl.BlockSpec((1, four_h), lambda i: (0, 0)),     # fused bias
                pl.BlockSpec((H, four_h), lambda i: (0, 0)),     # W_hh^T
            ],
            out_specs=pl.BlockSpec((1, H), lambda i: (0, 0)),
            scratch_shapes=[pltpu.VMEM((T, four_h), jnp.float32)],
        ),
        compiler_params=pltpu.CompilerParams(
            dimension_semantics=("arbitrary",),   # single, strictly sequential call
            vmem_limit_bytes=vmem_limit,
        ),
    )(x, wih_t, b, whh_t)

    return out.reshape(H)   # torch.squeeze of a (1, H) tensor


# ----------------------------------------------------------------------------
# Pure-JAX reference
# ----------------------------------------------------------------------------
def _reference(seq, w_ih, b_ih, w_hh, b_hh):
    T, _, D = seq.shape
    H = w_ih.shape[0] // 4
    h = jnp.zeros((1, H), jnp.float32)
    c = jnp.zeros((1, H), jnp.float32)
    for t in range(T):
        gates = seq[t] @ w_ih.T + b_ih + h @ w_hh.T + b_hh
        i, f, g, o = jnp.split(gates, 4, axis=1)
        c = jax.nn.sigmoid(f) * c + jax.nn.sigmoid(i) * jnp.tanh(g)
        h = jax.nn.sigmoid(o) * jnp.tanh(c)
    return h.reshape(H)


if __name__ == "__main__":
    key = jax.random.PRNGKey(0)

    input_size = 64     # total number of parameters in each "paramsvec"
    hidden_size = 32
    T = 8               # len(Ms): number of parameter collections (sequence length)

    # Simulate Ms: each paramsvec is a couple of small tensors that flatten to
    # `input_size` elements total (parameters_to_vector -> view(1, numel)).
    # TODO(synk): the host-side flattening of torch ParameterLists has no Pallas
    # equivalent; it is emulated here with reshape/concatenate preprocessing.
    k_ms, k_wih, k_whh, k_bih, k_bhh = jax.random.split(key, 5)
    vecs = []
    mk = jax.random.split(k_ms, T)
    for t in range(T):
        ka, kb = jax.random.split(mk[t])
        p0 = jax.random.normal(ka, (4, 8), jnp.float32)    # 32 elems
        p1 = jax.random.normal(kb, (32,), jnp.float32)     # 32 elems
        vec = jnp.concatenate([p0.reshape(-1), p1.reshape(-1)]).reshape(1, input_size)
        vecs.append(vec)
    seq = jnp.stack(vecs, axis=0)                          # (T, 1, D)

    # Deterministic Linear-style parameter init (uniform +/- 1/sqrt(fan_in)).
    bound_ih = 1.0 / jnp.sqrt(jnp.float32(input_size))
    bound_hh = 1.0 / jnp.sqrt(jnp.float32(hidden_size))
    w_ih = jax.random.uniform(k_wih, (4 * hidden_size, input_size),
                              jnp.float32, -bound_ih, bound_ih)
    b_ih = jax.random.uniform(k_bih, (4 * hidden_size,),
                              jnp.float32, -bound_ih, bound_ih)
    w_hh = jax.random.uniform(k_whh, (4 * hidden_size, hidden_size),
                              jnp.float32, -bound_hh, bound_hh)
    b_hh = jax.random.uniform(k_bhh, (4 * hidden_size,),
                              jnp.float32, -bound_hh, bound_hh)

    out = rnn_for_weight(seq, w_ih, b_ih, w_hh, b_hh)
    out = jax.block_until_ready(out)

    ref = _reference(seq, w_ih, b_ih, w_hh, b_hh)
    assert out.shape == (hidden_size,)
    assert jnp.allclose(out, ref, atol=1e-4, rtol=1e-4), (out, ref)

    print("KERNEL_OK")
</pallas_src>

<mosaic_0001>
module attributes {stable_mosaic.version = 11 : i64} {
  func.func @_fused_lstm_kernel(%arg0: i32, %arg1: memref<8x64xf32, #tpu.memory_space<vmem>>, %arg2: memref<64x128xf32, #tpu.memory_space<vmem>>, %arg3: memref<1x128xf32, #tpu.memory_space<vmem>>, %arg4: memref<32x128xf32, #tpu.memory_space<vmem>>, %arg5: memref<1x32xf32, #tpu.memory_space<vmem>>, %arg6: memref<8x128xf32, #tpu.memory_space<vmem>>) attributes {dimension_semantics = [#tpu.dimension_semantics<arbitrary>], iteration_bounds = array<i64: 1>, scalar_prefetch = 0 : i64, scratch_operands = 1 : i64, tpu.core_type = #tpu.core_type<tc>, window_params = [{pipeline_mode = #tpu.pipeline_mode<synchronous>, transform_indices = @transform_0, window_bounds = array<i64: 8, 64>}, {pipeline_mode = #tpu.pipeline_mode<synchronous>, transform_indices = @transform_1, window_bounds = array<i64: 64, 128>}, {pipeline_mode = #tpu.pipeline_mode<synchronous>, transform_indices = @transform_2, window_bounds = array<i64: 1, 128>}, {pipeline_mode = #tpu.pipeline_mode<synchronous>, transform_indices = @transform_3, window_bounds = array<i64: 32, 128>}, {pipeline_mode = #tpu.pipeline_mode<synchronous>, transform_indices = @transform_4, window_bounds = array<i64: 1, 32>}]} {
    %c0 = arith.constant 0 : index
    %c0_0 = arith.constant 0 : index
    %0 = vector.load %arg1[%c0, %c0_0] : memref<8x64xf32, #tpu.memory_space<vmem>>, vector<8x64xf32>
    %c0_1 = arith.constant 0 : index
    %c0_2 = arith.constant 0 : index
    %1 = vector.load %arg2[%c0_1, %c0_2] : memref<64x128xf32, #tpu.memory_space<vmem>>, vector<64x128xf32>
    %cst = arith.constant dense<0.000000e+00> : vector<8x128xf32>
    %2 = tpu.matmul %0, %1, %cst {dimension_numbers = #tpu.dot_dimension_numbers<[1], [0], [0], [1], [0, 0, 1, 1], [], []>} : vector<8x64xf32>, vector<64x128xf32>, vector<8x128xf32> -> vector<8x128xf32>
    %c0_3 = arith.constant 0 : index
    %c0_4 = arith.constant 0 : index
    %3 = vector.load %arg3[%c0_3, %c0_4] : memref<1x128xf32, #tpu.memory_space<vmem>>, vector<1x128xf32>
    %4 = vector.broadcast %3 : vector<1x128xf32> to vector<8x128xf32>
    %5 = arith.addf %2, %4 : vector<8x128xf32>
    %c0_5 = arith.constant 0 : index
    %c0_6 = arith.constant 0 : index
    %6 = vector.load %arg6[%c0_5, %c0_6] : memref<8x128xf32, #tpu.memory_space<vmem>>, vector<8x128xf32>
    tpu.vector_store %arg6[%c0_5, %c0_6], %5 {strides = array<i32>} : memref<8x128xf32, #tpu.memory_space<vmem>>, vector<8x128xf32>,
    %c0_7 = arith.constant 0 : index
    %c0_8 = arith.constant 0 : index
    %7 = vector.load %arg4[%c0_7, %c0_8] : memref<32x128xf32, #tpu.memory_space<vmem>>, vector<32x128xf32>
    %cst_9 = arith.constant 0.000000e+00 : f32
    %8 = vector.broadcast %cst_9 : f32 to vector<1x32xf32>
    %cst_10 = arith.constant 0.000000e+00 : f32
    %9 = vector.broadcast %cst_10 : f32 to vector<1x32xf32>
    %c0_i32 = arith.constant 0 : i32
    %10 = arith.index_cast %c0_i32 : i32 to index
    %c0_11 = arith.constant 0 : index
    %11 = vector.load %arg6[%10, %c0_11] : memref<8x128xf32, #tpu.memory_space<vmem>>, vector<1x128xf32>
    %cst_12 = arith.constant dense<0.000000e+00> : vector<1x128xf32>
    %12 = tpu.matmul %8, %7, %cst_12 {dimension_numbers = #tpu.dot_dimension_numbers<[1], [0], [0], [1], [0, 0, 1, 1], [], []>} : vector<1x32xf32>, vector<32x128xf32>, vector<1x128xf32> -> vector<1x128xf32>
    %13 = arith.addf %11, %12 : vector<1x128xf32>
    %14 = arith.negf %13 : vector<1x128xf32>
    %15 = math.exp %14 : vector<1x128xf32>
    %cst_13 = arith.constant 1.000000e+00 : f32
    %16 = vector.broadcast %cst_13 : f32 to vector<1x128xf32>
    %17 = arith.addf %16, %15 : vector<1x128xf32>
    %18 = arith.divf %16, %17 : vector<1x128xf32>
    %19 = vector.extract_strided_slice %18 {offsets = [0, 0], sizes = [1, 32], strides = [1, 1]} : vector<1x128xf32> to vector<1x32xf32>
    %20 = vector.extract_strided_slice %18 {offsets = [0, 32], sizes = [1, 32], strides = [1, 1]} : vector<1x128xf32> to vector<1x32xf32>
    %21 = vector.extract_strided_slice %18 {offsets = [0, 96], sizes = [1, 32], strides = [1, 1]} : vector<1x128xf32> to vector<1x32xf32>
    %22 = vector.extract_strided_slice %13 {offsets = [0, 64], sizes = [1, 32], strides = [1, 1]} : vector<1x128xf32> to vector<1x32xf32>
    %23 = math.tanh %22 : vector<1x32xf32>
    %24 = arith.mulf %20, %9 : vector<1x32xf32>
    %25 = arith.mulf %19, %23 : vector<1x32xf32>
    %26 = arith.addf %24, %25 : vector<1x32xf32>
    %27 = math.tanh %26 : vector<1x32xf32>
    %28 = arith.mulf %21, %27 : vector<1x32xf32>
    %c1_i32 = arith.constant 1 : i32
    %29 = arith.index_cast %c1_i32 : i32 to index
    %c0_14 = arith.constant 0 : index
    %30 = vector.load %arg6[%29, %c0_14] : memref<8x128xf32, #tpu.memory_space<vmem>>, vector<1x128xf32>
    %cst_15 = arith.constant dense<0.000000e+00> : vector<1x128xf32>
    %31 = tpu.matmul %28, %7, %cst_15 {dimension_numbers = #tpu.dot_dimension_numbers<[1], [0], [0], [1], [0, 0, 1, 1], [], []>} : vector<1x32xf32>, vector<32x128xf32>, vector<1x128xf32> -> vector<1x128xf32>
    %32 = arith.addf %30, %31 : vector<1x128xf32>
    %33 = arith.negf %32 : vector<1x128xf32>
    %34 = math.exp %33 : vector<1x128xf32>
    %cst_16 = arith.constant 1.000000e+00 : f32
    %35 = vector.broadcast %cst_16 : f32 to vector<1x128xf32>
    %36 = arith.addf %35, %34 : vector<1x128xf32>
    %37 = arith.divf %35, %36 : vector<1x128xf32>
    %38 = vector.extract_strided_slice %37 {offsets = [0, 0], sizes = [1, 32], strides = [1, 1]} : vector<1x128xf32> to vector<1x32xf32>
    %39 = vector.extract_strided_slice %37 {offsets = [0, 32], sizes = [1, 32], strides = [1, 1]} : vector<1x128xf32> to vector<1x32xf32>
    %40 = vector.extract_strided_slice %37 {offsets = [0, 96], sizes = [1, 32], strides = [1, 1]} : vector<1x128xf32> to vector<1x32xf32>
    %41 = vector.extract_strided_slice %32 {offsets = [0, 64], sizes = [1, 32], strides = [1, 1]} : vector<1x128xf32> to vector<1x32xf32>
    %42 = math.tanh %41 : vector<1x32xf32>
    %43 = arith.mulf %39, %26 : vector<1x32xf32>
    %44 = arith.mulf %38, %42 : vector<1x32xf32>
    %45 = arith.addf %43, %44 : vector<1x32xf32>
    %46 = math.tanh %45 : vector<1x32xf32>
    %47 = arith.mulf %40, %46 : vector<1x32xf32>
    %c2_i32 = arith.constant 2 : i32
    %48 = arith.index_cast %c2_i32 : i32 to index
    %c0_17 = arith.constant 0 : index
    %49 = vector.load %arg6[%48, %c0_17] : memref<8x128xf32, #tpu.memory_space<vmem>>, vector<1x128xf32>
    %cst_18 = arith.constant dense<0.000000e+00> : vector<1x128xf32>
    %50 = tpu.matmul %47, %7, %cst_18 {dimension_numbers = #tpu.dot_dimension_numbers<[1], [0], [0], [1], [0, 0, 1, 1], [], []>} : vector<1x32xf32>, vector<32x128xf32>, vector<1x128xf32> -> vector<1x128xf32>
    %51 = arith.addf %49, %50 : vector<1x128xf32>
    %52 = arith.negf %51 : vector<1x128xf32>
    %53 = math.exp %52 : vector<1x128xf32>
    %cst_19 = arith.constant 1.000000e+00 : f32
    %54 = vector.broadcast %cst_19 : f32 to vector<1x128xf32>
    %55 = arith.addf %54, %53 : vector<1x128xf32>
    %56 = arith.divf %54, %55 : vector<1x128xf32>
    %57 = vector.extract_strided_slice %56 {offsets = [0, 0], sizes = [1, 32], strides = [1, 1]} : vector<1x128xf32> to vector<1x32xf32>
    %58 = vector.extract_strided_slice %56 {offsets = [0, 32], sizes = [1, 32], strides = [1, 1]} : vector<1x128xf32> to vector<1x32xf32>
    %59 = vector.extract_strided_slice %56 {offsets = [0, 96], sizes = [1, 32], strides = [1, 1]} : vector<1x128xf32> to vector<1x32xf32>
    %60 = vector.extract_strided_slice %51 {offsets = [0, 64], sizes = [1, 32], strides = [1, 1]} : vector<1x128xf32> to vector<1x32xf32>
    %61 = math.tanh %60 : vector<1x32xf32>
    %62 = arith.mulf %58, %45 : vector<1x32xf32>
    %63 = arith.mulf %57, %61 : vector<1x32xf32>
    %64 = arith.addf %62, %63 : vector<1x32xf32>
    %65 = math.tanh %64 : vector<1x32xf32>
    %66 = arith.mulf %59, %65 : vector<1x32xf32>
    %c3_i32 = arith.constant 3 : i32
    %67 = arith.index_cast %c3_i32 : i32 to index
    %c0_20 = arith.constant 0 : index
    %68 = vector.load %arg6[%67, %c0_20] : memref<8x128xf32, #tpu.memory_space<vmem>>, vector<1x128xf32>
    %cst_21 = arith.constant dense<0.000000e+00> : vector<1x128xf32>
    %69 = tpu.matmul %66, %7, %cst_21 {dimension_numbers = #tpu.dot_dimension_numbers<[1], [0], [0], [1], [0, 0, 1, 1], [], []>} : vector<1x32xf32>, vector<32x128xf32>, vector<1x128xf32> -> vector<1x128xf32>
    %70 = arith.addf %68, %69 : vector<1x128xf32>
    %71 = arith.negf %70 : vector<1x128xf32>
    %72 = math.exp %71 : vector<1x128xf32>
    %cst_22 = arith.constant 1.000000e+00 : f32
    %73 = vector.broadcast %cst_22 : f32 to vector<1x128xf32>
    %74 = arith.addf %73, %72 : vector<1x128xf32>
    %75 = arith.divf %73, %74 : vector<1x128xf32>
    %76 = vector.extract_strided_slice %75 {offsets = [0, 0], sizes = [1, 32], strides = [1, 1]} : vector<1x128xf32> to vector<1x32xf32>
    %77 = vector.extract_strided_slice %75 {offsets = [0, 32], sizes = [1, 32], strides = [1, 1]} : vector<1x128xf32> to vector<1x32xf32>
    %78 = vector.extract_strided_slice %75 {offsets = [0, 96], sizes = [1, 32], strides = [1, 1]} : vector<1x128xf32> to vector<1x32xf32>
    %79 = vector.extract_strided_slice %70 {offsets = [0, 64], sizes = [1, 32], strides = [1, 1]} : vector<1x128xf32> to vector<1x32xf32>
    %80 = math.tanh %79 : vector<1x32xf32>
    %81 = arith.mulf %77, %64 : vector<1x32xf32>
    %82 = arith.mulf %76, %80 : vector<1x32xf32>
    %83 = arith.addf %81, %82 : vector<1x32xf32>
    %84 = math.tanh %83 : vector<1x32xf32>
    %85 = arith.mulf %78, %84 : vector<1x32xf32>
    %c4_i32 = arith.constant 4 : i32
    %86 = arith.index_cast %c4_i32 : i32 to index
    %c0_23 = arith.constant 0 : index
    %87 = vector.load %arg6[%86, %c0_23] : memref<8x128xf32, #tpu.memory_space<vmem>>, vector<1x128xf32>
    %cst_24 = arith.constant dense<0.000000e+00> : vector<1x128xf32>
    %88 = tpu.matmul %85, %7, %cst_24 {dimension_numbers = #tpu.dot_dimension_numbers<[1], [0], [0], [1], [0, 0, 1, 1], [], []>} : vector<1x32xf32>, vector<32x128xf32>, vector<1x128xf32> -> vector<1x128xf32>
    %89 = arith.addf %87, %88 : vector<1x128xf32>
    %90 = arith.negf %89 : vector<1x128xf32>
    %91 = math.exp %90 : vector<1x128xf32>
    %cst_25 = arith.constant 1.000000e+00 : f32
    %92 = vector.broadcast %cst_25 : f32 to vector<1x128xf32>
    %93 = arith.addf %92, %91 : vector<1x128xf32>
    %94 = arith.divf %92, %93 : vector<1x128xf32>
    %95 = vector.extract_strided_slice %94 {offsets = [0, 0], sizes = [1, 32], strides = [1, 1]} : vector<1x128xf32> to vector<1x32xf32>
    %96 = vector.extract_strided_slice %94 {offsets = [0, 32], sizes = [1, 32], strides = [1, 1]} : vector<1x128xf32> to vector<1x32xf32>
    %97 = vector.extract_strided_slice %94 {offsets = [0, 96], sizes = [1, 32], strides = [1, 1]} : vector<1x128xf32> to vector<1x32xf32>
    %98 = vector.extract_strided_slice %89 {offsets = [0, 64], sizes = [1, 32], strides = [1, 1]} : vector<1x128xf32> to vector<1x32xf32>
    %99 = math.tanh %98 : vector<1x32xf32>
    %100 = arith.mulf %96, %83 : vector<1x32xf32>
    %101 = arith.mulf %95, %99 : vector<1x32xf32>
    %102 = arith.addf %100, %101 : vector<1x32xf32>
    %103 = math.tanh %102 : vector<1x32xf32>
    %104 = arith.mulf %97, %103 : vector<1x32xf32>
    %c5_i32 = arith.constant 5 : i32
    %105 = arith.index_cast %c5_i32 : i32 to index
    %c0_26 = arith.constant 0 : index
    %106 = vector.load %arg6[%105, %c0_26] : memref<8x128xf32, #tpu.memory_space<vmem>>, vector<1x128xf32>
    %cst_27 = arith.constant dense<0.000000e+00> : vector<1x128xf32>
    %107 = tpu.matmul %104, %7, %cst_27 {dimension_numbers = #tpu.dot_dimension_numbers<[1], [0], [0], [1], [0, 0, 1, 1], [], []>} : vector<1x32xf32>, vector<32x128xf32>, vector<1x128xf32> -> vector<1x128xf32>
    %108 = arith.addf %106, %107 : vector<1x128xf32>
    %109 = arith.negf %108 : vector<1x128xf32>
    %110 = math.exp %109 : vector<1x128xf32>
    %cst_28 = arith.constant 1.000000e+00 : f32
    %111 = vector.broadcast %cst_28 : f32 to vector<1x128xf32>
    %112 = arith.addf %111, %110 : vector<1x128xf32>
    %113 = arith.divf %111, %112 : vector<1x128xf32>
    %114 = vector.extract_strided_slice %113 {offsets = [0, 0], sizes = [1, 32], strides = [1, 1]} : vector<1x128xf32> to vector<1x32xf32>
    %115 = vector.extract_strided_slice %113 {offsets = [0, 32], sizes = [1, 32], strides = [1, 1]} : vector<1x128xf32> to vector<1x32xf32>
    %116 = vector.extract_strided_slice %113 {offsets = [0, 96], sizes = [1, 32], strides = [1, 1]} : vector<1x128xf32> to vector<1x32xf32>
    %117 = vector.extract_strided_slice %108 {offsets = [0, 64], sizes = [1, 32], strides = [1, 1]} : vector<1x128xf32> to vector<1x32xf32>
    %118 = math.tanh %117 : vector<1x32xf32>
    %119 = arith.mulf %115, %102 : vector<1x32xf32>
    %120 = arith.mulf %114, %118 : vector<1x32xf32>
    %121 = arith.addf %119, %120 : vector<1x32xf32>
    %122 = math.tanh %121 : vector<1x32xf32>
    %123 = arith.mulf %116, %122 : vector<1x32xf32>
    %c6_i32 = arith.constant 6 : i32
    %124 = arith.index_cast %c6_i32 : i32 to index
    %c0_29 = arith.constant 0 : index
    %125 = vector.load %arg6[%124, %c0_29] : memref<8x128xf32, #tpu.memory_space<vmem>>, vector<1x128xf32>
    %cst_30 = arith.constant dense<0.000000e+00> : vector<1x128xf32>
    %126 = tpu.matmul %123, %7, %cst_30 {dimension_numbers = #tpu.dot_dimension_numbers<[1], [0], [0], [1], [0, 0, 1, 1], [], []>} : vector<1x32xf32>, vector<32x128xf32>, vector<1x128xf32> -> vector<1x128xf32>
    %127 = arith.addf %125, %126 : vector<1x128xf32>
    %128 = arith.negf %127 : vector<1x128xf32>
    %129 = math.exp %128 : vector<1x128xf32>
    %cst_31 = arith.constant 1.000000e+00 : f32
    %130 = vector.broadcast %cst_31 : f32 to vector<1x128xf32>
    %131 = arith.addf %130, %129 : vector<1x128xf32>
    %132 = arith.divf %130, %131 : vector<1x128xf32>
    %133 = vector.extract_strided_slice %132 {offsets = [0, 0], sizes = [1, 32], strides = [1, 1]} : vector<1x128xf32> to vector<1x32xf32>
    %134 = vector.extract_strided_slice %132 {offsets = [0, 32], sizes = [1, 32], strides = [1, 1]} : vector<1x128xf32> to vector<1x32xf32>
    %135 = vector.extract_strided_slice %132 {offsets = [0, 96], sizes = [1, 32], strides = [1, 1]} : vector<1x128xf32> to vector<1x32xf32>
    %136 = vector.extract_strided_slice %127 {offsets = [0, 64], sizes = [1, 32], strides = [1, 1]} : vector<1x128xf32> to vector<1x32xf32>
    %137 = math.tanh %136 : vector<1x32xf32>
    %138 = arith.mulf %134, %121 : vector<1x32xf32>
    %139 = arith.mulf %133, %137 : vector<1x32xf32>
    %140 = arith.addf %138, %139 : vector<1x32xf32>
    %141 = math.tanh %140 : vector<1x32xf32>
    %142 = arith.mulf %135, %141 : vector<1x32xf32>
    %c7_i32 = arith.constant 7 : i32
    %143 = arith.index_cast %c7_i32 : i32 to index
    %c0_32 = arith.constant 0 : index
    %144 = vector.load %arg6[%143, %c0_32] : memref<8x128xf32, #tpu.memory_space<vmem>>, vector<1x128xf32>
    %cst_33 = arith.constant dense<0.000000e+00> : vector<1x128xf32>
    %145 = tpu.matmul %142, %7, %cst_33 {dimension_numbers = #tpu.dot_dimension_numbers<[1], [0], [0], [1], [0, 0, 1, 1], [], []>} : vector<1x32xf32>, vector<32x128xf32>, vector<1x128xf32> -> vector<1x128xf32>
    %146 = arith.addf %144, %145 : vector<1x128xf32>
    %147 = arith.negf %146 : vector<1x128xf32>
    %148 = math.exp %147 : vector<1x128xf32>
    %cst_34 = arith.constant 1.000000e+00 : f32
    %149 = vector.broadcast %cst_34 : f32 to vector<1x128xf32>
    %150 = arith.addf %149, %148 : vector<1x128xf32>
    %151 = arith.divf %149, %150 : vector<1x128xf32>
    %152 = vector.extract_strided_slice %151 {offsets = [0, 0], sizes = [1, 32], strides = [1, 1]} : vector<1x128xf32> to vector<1x32xf32>
    %153 = vector.extract_strided_slice %151 {offsets = [0, 32], sizes = [1, 32], strides = [1, 1]} : vector<1x128xf32> to vector<1x32xf32>
    %154 = vector.extract_strided_slice %151 {offsets = [0, 96], sizes = [1, 32], strides = [1, 1]} : vector<1x128xf32> to vector<1x32xf32>
    %155 = vector.extract_strided_slice %146 {offsets = [0, 64], sizes = [1, 32], strides = [1, 1]} : vector<1x128xf32> to vector<1x32xf32>
    %156 = math.tanh %155 : vector<1x32xf32>
    %157 = arith.mulf %153, %140 : vector<1x32xf32>
    %158 = arith.mulf %152, %156 : vector<1x32xf32>
    %159 = arith.addf %157, %158 : vector<1x32xf32>
    %160 = math.tanh %159 : vector<1x32xf32>
    %161 = arith.mulf %154, %160 : vector<1x32xf32>
    %c8_i32 = arith.constant 8 : i32
    %c0_35 = arith.constant 0 : index
    %c0_36 = arith.constant 0 : index
    %162 = vector.load %arg5[%c0_35, %c0_36] : memref<1x32xf32, #tpu.memory_space<vmem>>, vector<1x32xf32>
    tpu.vector_store %arg5[%c0_35, %c0_36], %161 {strides = array<i32>} : memref<1x32xf32, #tpu.memory_space<vmem>>, vector<1x32xf32>,
    return
  }
  func.func @transform_0(%arg0: i32) -> (i32, i32) {
    %c0_i32 = arith.constant 0 : i32
    %c0_i32_0 = arith.constant 0 : i32
    %c0_i32_1 = arith.constant 0 : i32
    return %c0_i32, %c0_i32_0 : i32, i32
  }
  func.func @transform_1(%arg0: i32) -> (i32, i32) {
    %c0_i32 = arith.constant 0 : i32
    %c0_i32_0 = arith.constant 0 : i32
    %c0_i32_1 = arith.constant 0 : i32
    return %c0_i32, %c0_i32_0 : i32, i32
  }
  func.func @transform_2(%arg0: i32) -> (i32, i32) {
    %c0_i32 = arith.constant 0 : i32
    %c0_i32_0 = arith.constant 0 : i32
    %c0_i32_1 = arith.constant 0 : i32
    return %c0_i32, %c0_i32_0 : i32, i32
  }
  func.func @transform_3(%arg0: i32) -> (i32, i32) {
    %c0_i32 = arith.constant 0 : i32
    %c0_i32_0 = arith.constant 0 : i32
    %c0_i32_1 = arith.constant 0 : i32
    return %c0_i32, %c0_i32_0 : i32, i32
  }
  func.func @transform_4(%arg0: i32) -> (i32, i32) {
    %c0_i32 = arith.constant 0 : i32
    %c0_i32_0 = arith.constant 0 : i32
    %c0_i32_1 = arith.constant 0 : i32
    return %c0_i32, %c0_i32_0 : i32, i32
  }
}

</mosaic_0001>

<llo_original>
// kernel: tpu_custom_call.1
$region0: #{tpu_custom_call.1}
  #allocation0 [shape = 'u32[]', space=smem, size = 0x4, offset = 0x4, fixed_abs, tag = 'smem constant byte address 0x4 - core index']
  #allocation1 [shape = 'u32[144,128]{1,0:T(1,128)}', space=vmem, size = 0x12000, scoped, tag = 'internal scratch']
  #allocation2 [shape = 'f32[8,128]{1,0:T(8,128)}', space=vmem, size = 0x1000, scoped, tag = 'scratch operand']
  %s0 = inlined_call_operand.hbm [shape: f32[8,64], index: 0, kind: input, shape index: {}]
  %s1 = inlined_call_operand.hbm [shape: f32[64,128], index: 1, kind: input, shape index: {}]
  %s2 = inlined_call_operand.vmem [shape: f32[1,128], index: 2, kind: input, shape index: {}]
  %s3 = inlined_call_operand.hbm [shape: f32[32,128], index: 3, kind: input, shape index: {}]
  %s4 = inlined_call_operand.hbm [shape: f32[1,32], index: 4, kind: output, shape index: {}]
  %s5 = sld [smem:[#allocation0]]
  $region38: #{tpu_custom_call.1} parent=0
    _
  %s7 = ssub.s32 1, %s5
  %s8 = scalar_select 0, %s7, %s5
  $region1: #{tpu_custom_call.1} parent=0
    #allocation3 [shape = 'u8[4096]{0}', space=vmem, size = 0x1000, scoped, tag = 'input window, operand 0, single buffered']
    #allocation4 [shape = 's32[1]{0}', space=sflag, size = 0x4, scoped, tag = 'scoped memory for tpu_custom_call.1']
    #allocation5 [shape = 's32[1]{0}', space=sflag, size = 0x4, scoped, tag = 'scoped memory for tpu_custom_call.1']
    #allocation6 [shape = 'u8[32768]{0}', space=vmem, size = 0x8000, scoped, tag = 'input window, operand 1, single buffered']
    #allocation7 [shape = 's32[1]{0}', space=sflag, size = 0x4, scoped, tag = 'scoped memory for tpu_custom_call.1']
    #allocation8 [shape = 'u8[16384]{0}', space=vmem, size = 0x4000, scoped, tag = 'input window, operand 3, single buffered']
    #allocation9 [shape = 'u8[512]{0}', space=vmem, size = 0x400, scoped, tag = 'output window, operand 0, single buffered']
    %9 = vsyncpa [#allocation4], 0
    %10 = vsyncpa [#allocation7], 0
    %11 = vsyncpa [#allocation5], 0
    // Predicated region
    $region2: #{tpu_custom_call.1} parent=1 // pred_check
      _
    $region3: #{tpu_custom_call.1} parent=1 // pred_check_branch
      %13 = sbr.rel (0) target = $region5
    $region4: #{tpu_custom_call.1} parent=1 // pred_region
      %s15 = ssub.s32 128, 128
      %16 = vsyncadd [#allocation4], %s15
      %s18 = sshll.u32 [#allocation3], 4
      %s19 = int_to_ptr.vmem [resolvable:$true] %s18
      %21 = dma.hbm_to_vmem [thread:$0]  %s0, 128, %s19, [#allocation4]
    $region5: #{tpu_custom_call.1} parent=1 // pred_fallthru
      _
    // Predicated region
    $region6: #{tpu_custom_call.1} parent=1 // pred_check
      _
    $region7: #{tpu_custom_call.1} parent=1 // pred_check_branch
      %23 = sbr.rel (0) target = $region9
    $region8: #{tpu_custom_call.1} parent=1 // pred_region
      %s25 = ssub.s32 1024, 1024
      %26 = vsyncadd [#allocation7], %s25
      %s27 = sshll.u32 [#allocation6], 4
      %s28 = int_to_ptr.vmem [resolvable:$true] %s27
      %33 = dma.hbm_to_vmem [thread:$0]  %s1, 1024, %s28, [#allocation7], 128, 128, 8
    $region9: #{tpu_custom_call.1} parent=1 // pred_fallthru
      _
    // Predicated region
    $region10: #{tpu_custom_call.1} parent=1 // pred_check
      _
    $region11: #{tpu_custom_call.1} parent=1 // pred_check_branch
      %35 = sbr.rel (0) target = $region13
    $region12: #{tpu_custom_call.1} parent=1 // pred_region
      _
    $region13: #{tpu_custom_call.1} parent=1 // pred_fallthru
      _
    // Predicated region
    $region14: #{tpu_custom_call.1} parent=1 // pred_check
      _
    $region15: #{tpu_custom_call.1} parent=1 // pred_check_branch
      %37 = sbr.rel (0) target = $region17
    $region16: #{tpu_custom_call.1} parent=1 // pred_region
      %s39 = ssub.s32 512, 512
      %40 = vsyncadd [#allocation7], %s39
      %s41 = sshll.u32 [#allocation8], 4
      %s42 = int_to_ptr.vmem [resolvable:$true] %s41
      %47 = dma.hbm_to_vmem [thread:$0]  %s3, 512, %s42, [#allocation7], 128, 128, 8
    $region17: #{tpu_custom_call.1} parent=1 // pred_fallthru
      _
    // Predicated region
    $region18: #{tpu_custom_call.1} parent=1 // pred_check
      _
    $region19: #{tpu_custom_call.1} parent=1 // pred_check_branch
      %49 = sbr.rel (0) target = $region21
    $region20: #{tpu_custom_call.1} parent=1 // pred_region
      %50 = dma.done [#allocation4], 128
    $region21: #{tpu_custom_call.1} parent=1 // pred_fallthru
      _
    // Predicated region
    $region22: #{tpu_custom_call.1} parent=1 // pred_check
      _
    $region23: #{tpu_custom_call.1} parent=1 // pred_check_branch
      %52 = sbr.rel (0) target = $region25
    $region24: #{tpu_custom_call.1} parent=1 // pred_region
      %53 = dma.done [#allocation7], 1024
    $region25: #{tpu_custom_call.1} parent=1 // pred_fallthru
      _
    // Predicated region
    $region26: #{tpu_custom_call.1} parent=1 // pred_check
      _
    $region27: #{tpu_custom_call.1} parent=1 // pred_check_branch
      %55 = sbr.rel (0) target = $region29
    $region28: #{tpu_custom_call.1} parent=1 // pred_region
      %56 = dma.done [#allocation7], 512
    $region29: #{tpu_custom_call.1} parent=1 // pred_fallthru
      _
    %v57 = vld [vmem:[#allocation3] sm:$0xff]
    %v58 = vld [vmem:[#allocation6] sm:$0xff]
    %v59 = vld [vmem:[#allocation6 + $0x8] sm:$0xff]
    %v60 = vld [vmem:[#allocation6 + $0x10] sm:$0xff]
    %v61 = vld [vmem:[#allocation6 + $0x18] sm:$0xff]
    %v62 = vld [vmem:[#allocation6 + $0x20] sm:$0xff]
    %v63 = vld [vmem:[#allocation6 + $0x28] sm:$0xff]
    %v64 = vld [vmem:[#allocation6 + $0x30] sm:$0xff]
    %v65 = vld [vmem:[#allocation6 + $0x38] sm:$0xff]
    %v66 = vld [vmem:[%s2] sm:$0x1]
    %v68 = vlaneseq
    %v69 = vshrl.u32 %v68, 7
    %v70 = vsub.s32 0, %v69
    %v71 = vrot.slane %v66, %v70
    %vm73 = vcmask 523264
    %v75 = vsel %vm73, %v57, 0
    %77 = vmatprep.subr.mxu0 0.0
    %78 = vmatpush1.msra.mxu0 0.0
    %79 = vmatprep.subr.mxu0 0.0
    %80 = vmatpush1.msra.mxu0 0.0
    %81 = vmatprep.subr.mxu0 0.0
    %82 = vmatpush1.msra.mxu0 0.0
    %83 = vmatprep.subr.mxu0 0.0
    %84 = vmatpush1.msra.mxu0 0.0
    %85 = vmatprep.subr.mxu0 0.0
    %86 = vmatpush1.msra.mxu0 0.0
    %87 = vmatprep.subr.mxu0 0.0
    %88 = vmatpush1.msra.mxu0 0.0
    %89 = vmatprep.subr.mxu0 0.0
    %90 = vmatpush1.msra.mxu0 0.0
    %91 = vmatprep.subr.mxu0 0.0
    %92 = vmatpush1.msra.mxu0 0.0
    %93 = vmatprep.subr.mxu0 0.0
    %94 = vmatpush1.msra.mxu0 %v65
    %95 = vmatprep.subr.mxu0 0.0
    %96 = vmatpush1.msra.mxu0 %v64
    %97 = vmatprep.subr.mxu0 0.0
    %98 = vmatpush1.msra.mxu0 %v63
    %99 = vmatprep.subr.mxu0 0.0
    %100 = vmatpush1.msra.mxu0 %v62
    %101 = vmatprep.subr.mxu0 0.0
    %102 = vmatpush1.msra.mxu0 %v61
    %103 = vmatprep.subr.mxu0 0.0
    %104 = vmatpush1.msra.mxu0 %v60
    %105 = vmatprep.subr.mxu0 0.0
    %106 = vmatpush1.msra.mxu0 %v59
    %107 = vmatprep.subr.mxu0 0.0
    %108 = vmatpush1.msra.mxu0 %v58
    %109 = vmatprep.subr.mxu0 0.0
    %110 = vmatpush2.msra.mxu0 0.0
    %111 = vmatprep.subr.mxu0 0.0
    %112 = vmatpush2.msra.mxu0 0.0
    %113 = vmatprep.subr.mxu0 0.0
    %114 = vmatpush2.msra.mxu0 0.0
    %115 = vmatprep.subr.mxu0 0.0
    %116 = vmatpush2.msra.mxu0 0.0
    %117 = vmatprep.subr.mxu0 0.0
    %118 = vmatpush2.msra.mxu0 0.0
    %119 = vmatprep.subr.mxu0 0.0
    %120 = vmatpush2.msra.mxu0 0.0
    %121 = vmatprep.subr.mxu0 0.0
    %122 = vmatpush2.msra.mxu0 0.0
    %123 = vmatprep.subr.mxu0 0.0
    %124 = vmatpush2.msra.mxu0 0.0
    %125 = vmatprep.subr.mxu0 0.0
    %126 = vmatpush2.msra.mxu0 0.0
    %127 = vmatprep.subr.mxu0 0.0
    %128 = vmatpush2.msra.mxu0 0.0
    %129 = vmatprep.subr.mxu0 0.0
    %130 = vmatpush2.msra.mxu0 0.0
    %131 = vmatprep.subr.mxu0 0.0
    %132 = vmatpush2.msra.mxu0 0.0
    %133 = vmatprep.subr.mxu0 0.0
    %134 = vmatpush2.msra.mxu0 0.0
    %135 = vmatprep.subr.mxu0 0.0
    %136 = vmatpush2.msra.mxu0 0.0
    %137 = vmatprep.subr.mxu0 0.0
    %138 = vmatpush2.msra.mxu0 0.0
    %139 = vmatprep.subr.mxu0 0.0
    %140 = vmatpush2.msra.mxu0 0.0
    %141 = vmatprep.mubr.f32.mxu0 0.0
    %142 = vmatmul.mubr.f32.gmra.mxu0 %v75
    %v143 = vpop.f32.mrf.mxu0
    %v144 = vadd.f32 %v71, %v143
    %v145 = vpop.f32.mrf.mxu0
    %146 = vdwg.mxu0
    %147 = vst [vmem:[#allocation2] sm:$0xff] %v144
    %v148 = vld [vmem:[#allocation8] sm:$0xff]
    %v149 = vld [vmem:[#allocation8 + $0x8] sm:$0xff]
    %v150 = vld [vmem:[#allocation8 + $0x10] sm:$0xff]
    %v151 = vld [vmem:[#allocation8 + $0x18] sm:$0xff]
    %v152 = vld [vmem:[#allocation2] sm:$0x1]
    %vm153 = vcmask 261120
    %v155 = vsel %vm153, 0.0, 0
    %157 = vmatprep.subr.mxu0 0.0
    %158 = vmatpush1.msra.mxu0 0.0
    %159 = vmatprep.subr.mxu0 0.0
    %160 = vmatpush1.msra.mxu0 0.0
    %161 = vmatprep.subr.mxu0 0.0
    %162 = vmatpush1.msra.mxu0 0.0
    %163 = vmatprep.subr.mxu0 0.0
    %164 = vmatpush1.msra.mxu0 0.0
    %165 = vmatprep.subr.mxu0 0.0
    %166 = vmatpush1.msra.mxu0 0.0
    %167 = vmatprep.subr.mxu0 0.0
    %168 = vmatpush1.msra.mxu0 0.0
    %169 = vmatprep.subr.mxu0 0.0
    %170 = vmatpush1.msra.mxu0 0.0
    %171 = vmatprep.subr.mxu0 0.0
    %172 = vmatpush1.msra.mxu0 0.0
    %173 = vmatprep.subr.mxu0 0.0
    %174 = vmatpush1.msra.mxu0 0.0
    %175 = vmatprep.subr.mxu0 0.0
    %176 = vmatpush1.msra.mxu0 0.0
    %177 = vmatprep.subr.mxu0 0.0
    %178 = vmatpush1.msra.mxu0 0.0
    %179 = vmatprep.subr.mxu0 0.0
    %180 = vmatpush1.msra.mxu0 0.0
    %181 = vmatprep.subr.mxu0 0.0
    %182 = vmatpush1.msra.mxu0 %v151
    %183 = vmatprep.subr.mxu0 0.0
    %184 = vmatpush1.msra.mxu0 %v150
    %185 = vmatprep.subr.mxu0 0.0
    %186 = vmatpush1.msra.mxu0 %v149
    %187 = vmatprep.subr.mxu0 0.0
    %188 = vmatpush1.msra.mxu0 %v148
    %189 = vmatprep.subr.mxu0 0.0
    %190 = vmatpush2.msra.mxu0 0.0
    %191 = vmatprep.subr.mxu0 0.0
    %192 = vmatpush2.msra.mxu0 0.0
    %193 = vmatprep.subr.mxu0 0.0
    %194 = vmatpush2.msra.mxu0 0.0
    %195 = vmatprep.subr.mxu0 0.0
    %196 = vmatpush2.msra.mxu0 0.0
    %197 = vmatprep.subr.mxu0 0.0
    %198 = vmatpush2.msra.mxu0 0.0
    %199 = vmatprep.subr.mxu0 0.0
    %200 = vmatpush2.msra.mxu0 0.0
    %201 = vmatprep.subr.mxu0 0.0
    %202 = vmatpush2.msra.mxu0 0.0
    %203 = vmatprep.subr.mxu0 0.0
    %204 = vmatpush2.msra.mxu0 0.0
    %205 = vmatprep.subr.mxu0 0.0
    %206 = vmatpush2.msra.mxu0 0.0
    %207 = vmatprep.subr.mxu0 0.0
    %208 = vmatpush2.msra.mxu0 0.0
    %209 = vmatprep.subr.mxu0 0.0
    %210 = vmatpush2.msra.mxu0 0.0
    %211 = vmatprep.subr.mxu0 0.0
    %212 = vmatpush2.msra.mxu0 0.0
    %213 = vmatprep.subr.mxu0 0.0
    %214 = vmatpush2.msra.mxu0 0.0
    %215 = vmatprep.subr.mxu0 0.0
    %216 = vmatpush2.msra.mxu0 0.0
    %217 = vmatprep.subr.mxu0 0.0
    %218 = vmatpush2.msra.mxu0 0.0
    %219 = vmatprep.subr.mxu0 0.0
    %220 = vmatpush2.msra.mxu0 0.0
    %221 = vmatprep.mubr.f32.mxu0 0.0
    %222 = vmatmul.mubr.f32.gmra.mxu0 %v155
    %v223 = vpop.f32.mrf.mxu0
    %v224 = vadd.f32 0.0, %v223
    %v225 = vpop.f32.mrf.mxu0
    %226 = vdwg.mxu0
    %v227 = vadd.f32 %v152, %v224
    %v228 = vxor.u32 %v227, 2147483648
    %v229 = vmul.f32 %v228, 1.442695
    %v230 = vpow.pop %v229
    %v231 = vadd.f32 %v230, 1.0
    %v232 = vrcp.pop %v231
    %v233 = vmul.f32 1.0, %v232
    %v234 = vtanh.pop %v227
    %v235 = vmul.f32 %v233, 0.0
    %237 = vrot.lane.b32.xlu0 %v234, 64
    %v238 = vpop.permute.xlu0 %237
    %v240 = vmul.f32 %v233, %v238
    %242 = vrot.lane.b32.xlu0 %v240, 32
    %v243 = vpop.permute.xlu0 %242
    %v245 = vadd.f32 %v235, %v243
    %v246 = vtanh.pop %v245
    %248 = vrot.lane.b32.xlu0 %v246, 64
    %v249 = vpop.permute.xlu0 %248
    %v251 = vmul.f32 %v233, %v249
    %v252 = vld [vmem:[#allocation2 + $0x1] sm:$0x1]
    %254 = vrot.lane.b32.xlu0 %v251, 32
    %v255 = vpop.permute.xlu0 %254
    %v256 = vsel %vm153, %v255, 0
    %258 = vmatprep.subr.mxu0 0.0
    %259 = vmatpush1.msra.mxu0 0.0
    %260 = vmatprep.subr.mxu0 0.0
    %261 = vmatpush1.msra.mxu0 0.0
    %262 = vmatprep.subr.mxu0 0.0
    %263 = vmatpush1.msra.mxu0 0.0
    %264 = vmatprep.subr.mxu0 0.0
    %265 = vmatpush1.msra.mxu0 0.0
    %266 = vmatprep.subr.mxu0 0.0
    %267 = vmatpush1.msra.mxu0 0.0
    %268 = vmatprep.subr.mxu0 0.0
    %269 = vmatpush1.msra.mxu0 0.0
    %270 = vmatprep.subr.mxu0 0.0
    %271 = vmatpush1.msra.mxu0 0.0
    %272 = vmatprep.subr.mxu0 0.0
    %273 = vmatpush1.msra.mxu0 0.0
    %274 = vmatprep.subr.mxu0 0.0
    %275 = vmatpush1.msra.mxu0 0.0
    %276 = vmatprep.subr.mxu0 0.0
    %277 = vmatpush1.msra.mxu0 0.0
    %278 = vmatprep.subr.mxu0 0.0
    %279 = vmatpush1.msra.mxu0 0.0
    %280 = vmatprep.subr.mxu0 0.0
    %281 = vmatpush1.msra.mxu0 0.0
    %282 = vmatprep.subr.mxu0 0.0
    %283 = vmatpush1.msra.mxu0 %v151
    %284 = vmatprep.subr.mxu0 0.0
    %285 = vmatpush1.msra.mxu0 %v150
    %286 = vmatprep.subr.mxu0 0.0
    %287 = vmatpush1.msra.mxu0 %v149
    %288 = vmatprep.subr.mxu0 0.0
    %289 = vmatpush1.msra.mxu0 %v148
    %290 = vmatprep.subr.mxu0 0.0
    %291 = vmatpush2.msra.mxu0 0.0
    %292 = vmatprep.subr.mxu0 0.0
    %293 = vmatpush2.msra.mxu0 0.0
    %294 = vmatprep.subr.mxu0 0.0
    %295 = vmatpush2.msra.mxu0 0.0
    %296 = vmatprep.subr.mxu0 0.0
    %297 = vmatpush2.msra.mxu0 0.0
    %298 = vmatprep.subr.mxu0 0.0
    %299 = vmatpush2.msra.mxu0 0.0
    %300 = vmatprep.subr.mxu0 0.0
    %301 = vmatpush2.msra.mxu0 0.0
    %302 = vmatprep.subr.mxu0 0.0
    %303 = vmatpush2.msra.mxu0 0.0
    %304 = vmatprep.subr.mxu0 0.0
    %305 = vmatpush2.msra.mxu0 0.0
    %306 = vmatprep.subr.mxu0 0.0
    %307 = vmatpush2.msra.mxu0 0.0
    %308 = vmatprep.subr.mxu0 0.0
    %309 = vmatpush2.msra.mxu0 0.0
    %310 = vmatprep.subr.mxu0 0.0
    %311 = vmatpush2.msra.mxu0 0.0
    %312 = vmatprep.subr.mxu0 0.0
    %313 = vmatpush2.msra.mxu0 0.0
    %314 = vmatprep.subr.mxu0 0.0
    %315 = vmatpush2.msra.mxu0 0.0
    %316 = vmatprep.subr.mxu0 0.0
    %317 = vmatpush2.msra.mxu0 0.0
    %318 = vmatprep.subr.mxu0 0.0
    %319 = vmatpush2.msra.mxu0 0.0
    %320 = vmatprep.subr.mxu0 0.0
    %321 = vmatpush2.msra.mxu0 0.0
    %322 = vmatprep.mubr.f32.mxu0 0.0
    %323 = vmatmul.mubr.f32.gmra.mxu0 %v256
    %v324 = vpop.f32.mrf.mxu0
    %v325 = vadd.f32 0.0, %v324
    %v326 = vpop.f32.mrf.mxu0
    %327 = vdwg.mxu0
    %v328 = vadd.f32 %v252, %v325
    %v329 = vxor.u32 %v328, 2147483648
    %v330 = vmul.f32 %v329, 1.442695
    %v331 = vpow.pop %v330
    %v332 = vadd.f32 %v331, 1.0
    %v333 = vrcp.pop %v332
    %v334 = vmul.f32 1.0, %v333
    %v335 = vtanh.pop %v328
    %v336 = vmul.f32 %v334, %v245
    %338 = vrot.lane.b32.xlu0 %v335, 64
    %v339 = vpop.permute.xlu0 %338
    %v341 = vmul.f32 %v334, %v339
    %343 = vrot.lane.b32.xlu0 %v341, 32
    %v344 = vpop.permute.xlu0 %343
    %v346 = vadd.f32 %v336, %v344
    %v347 = vtanh.pop %v346
    %349 = vrot.lane.b32.xlu0 %v347, 64
    %v350 = vpop.permute.xlu0 %349
    %v352 = vmul.f32 %v334, %v350
    %v353 = vld [vmem:[#allocation2 + $0x2] sm:$0x1]
    %355 = vrot.lane.b32.xlu0 %v352, 32
    %v356 = vpop.permute.xlu0 %355
    %v357 = vsel %vm153, %v356, 0
    %359 = vmatprep.subr.mxu0 0.0
    %360 = vmatpush1.msra.mxu0 0.0
    %361 = vmatprep.subr.mxu0 0.0
    %362 = vmatpush1.msra.mxu0 0.0
    %363 = vmatprep.subr.mxu0 0.0
    %364 = vmatpush1.msra.mxu0 0.0
    %365 = vmatprep.subr.mxu0 0.0
    %366 = vmatpush1.msra.mxu0 0.0
    %367 = vmatprep.subr.mxu0 0.0
    %368 = vmatpush1.msra.mxu0 0.0
    %369 = vmatprep.subr.mxu0 0.0
    %370 = vmatpush1.msra.mxu0 0.0
    %371 = vmatprep.subr.mxu0 0.0
    %372 = vmatpush1.msra.mxu0 0.0
    %373 = vmatprep.subr.mxu0 0.0
    %374 = vmatpush1.msra.mxu0 0.0
    %375 = vmatprep.subr.mxu0 0.0
    %376 = vmatpush1.msra.mxu0 0.0
    %377 = vmatprep.subr.mxu0 0.0
    %378 = vmatpush1.msra.mxu0 0.0
    %379 = vmatprep.subr.mxu0 0.0
    %380 = vmatpush1.msra.mxu0 0.0
    %381 = vmatprep.subr.mxu0 0.0
    %382 = vmatpush1.msra.mxu0 0.0
    %383 = vmatprep.subr.mxu0 0.0
    %384 = vmatpush1.msra.mxu0 %v151
    %385 = vmatprep.subr.mxu0 0.0
    %386 = vmatpush1.msra.mxu0 %v150
    %387 = vmatprep.subr.mxu0 0.0
    %388 = vmatpush1.msra.mxu0 %v149
    %389 = vmatprep.subr.mxu0 0.0
    %390 = vmatpush1.msra.mxu0 %v148
    %391 = vmatprep.subr.mxu0 0.0
    %392 = vmatpush2.msra.mxu0 0.0
    %393 = vmatprep.subr.mxu0 0.0
    %394 = vmatpush2.msra.mxu0 0.0
    %395 = vmatprep.subr.mxu0 0.0
    %396 = vmatpush2.msra.mxu0 0.0
    %397 = vmatprep.subr.mxu0 0.0
    %398 = vmatpush2.msra.mxu0 0.0
    %399 = vmatprep.subr.mxu0 0.0
    %400 = vmatpush2.msra.mxu0 0.0
    %401 = vmatprep.subr.mxu0 0.0
    %402 = vmatpush2.msra.mxu0 0.0
    %403 = vmatprep.subr.mxu0 0.0
    %404 = vmatpush2.msra.mxu0 0.0
    %405 = vmatprep.subr.mxu0 0.0
    %406 = vmatpush2.msra.mxu0 0.0
    %407 = vmatprep.subr.mxu0 0.0
    %408 = vmatpush2.msra.mxu0 0.0
    %409 = vmatprep.subr.mxu0 0.0
    %410 = vmatpush2.msra.mxu0 0.0
    %411 = vmatprep.subr.mxu0 0.0
    %412 = vmatpush2.msra.mxu0 0.0
    %413 = vmatprep.subr.mxu0 0.0
    %414 = vmatpush2.msra.mxu0 0.0
    %415 = vmatprep.subr.mxu0 0.0
    %416 = vmatpush2.msra.mxu0 0.0
    %417 = vmatprep.subr.mxu0 0.0
    %418 = vmatpush2.msra.mxu0 0.0
    %419 = vmatprep.subr.mxu0 0.0
    %420 = vmatpush2.msra.mxu0 0.0
    %421 = vmatprep.subr.mxu0 0.0
    %422 = vmatpush2.msra.mxu0 0.0
    %423 = vmatprep.mubr.f32.mxu0 0.0
    %424 = vmatmul.mubr.f32.gmra.mxu0 %v357
    %v425 = vpop.f32.mrf.mxu0
    %v426 = vadd.f32 0.0, %v425
    %v427 = vpop.f32.mrf.mxu0
    %428 = vdwg.mxu0
    %v429 = vadd.f32 %v353, %v426
    %v430 = vxor.u32 %v429, 2147483648
    %v431 = vmul.f32 %v430, 1.442695
    %v432 = vpow.pop %v431
    %v433 = vadd.f32 %v432, 1.0
    %v434 = vrcp.pop %v433
    %v435 = vmul.f32 1.0, %v434
    %v436 = vtanh.pop %v429
    %v437 = vmul.f32 %v435, %v346
    %439 = vrot.lane.b32.xlu0 %v436, 64
    %v440 = vpop.permute.xlu0 %439
    %v442 = vmul.f32 %v435, %v440
    %444 = vrot.lane.b32.xlu0 %v442, 32
    %v445 = vpop.permute.xlu0 %444
    %v447 = vadd.f32 %v437, %v445
    %v448 = vtanh.pop %v447
    %450 = vrot.lane.b32.xlu0 %v448, 64
    %v451 = vpop.permute.xlu0 %450
    %v453 = vmul.f32 %v435, %v451
    %v454 = vld [vmem:[#allocation2 + $0x3] sm:$0x1]
    %456 = vrot.lane.b32.xlu0 %v453, 32
    %v457 = vpop.permute.xlu0 %456
    %v458 = vsel %vm153, %v457, 0
    %460 = vmatprep.subr.mxu0 0.0
    %461 = vmatpush1.msra.mxu0 0.0
    %462 = vmatprep.subr.mxu0 0.0
    %463 = vmatpush1.msra.mxu0 0.0
    %464 = vmatprep.subr.mxu0 0.0
    %465 = vmatpush1.msra.mxu0 0.0
    %466 = vmatprep.subr.mxu0 0.0
    %467 = vmatpush1.msra.mxu0 0.0
    %468 = vmatprep.subr.mxu0 0.0
    %469 = vmatpush1.msra.mxu0 0.0
    %470 = vmatprep.subr.mxu0 0.0
    %471 = vmatpush1.msra.mxu0 0.0
    %472 = vmatprep.subr.mxu0 0.0
    %473 = vmatpush1.msra.mxu0 0.0
    %474 = vmatprep.subr.mxu0 0.0
    %475 = vmatpush1.msra.mxu0 0.0
    %476 = vmatprep.subr.mxu0 0.0
    %477 = vmatpush1.msra.mxu0 0.0
    %478 = vmatprep.subr.mxu0 0.0
    %479 = vmatpush1.msra.mxu0 0.0
    %480 = vmatprep.subr.mxu0 0.0
    %481 = vmatpush1.msra.mxu0 0.0
    %482 = vmatprep.subr.mxu0 0.0
    %483 = vmatpush1.msra.mxu0 0.0
    %484 = vmatprep.subr.mxu0 0.0
    %485 = vmatpush1.msra.mxu0 %v151
    %486 = vmatprep.subr.mxu0 0.0
    %487 = vmatpush1.msra.mxu0 %v150
    %488 = vmatprep.subr.mxu0 0.0
    %489 = vmatpush1.msra.mxu0 %v149
    %490 = vmatprep.subr.mxu0 0.0
    %491 = vmatpush1.msra.mxu0 %v148
    %492 = vmatprep.subr.mxu0 0.0
    %493 = vmatpush2.msra.mxu0 0.0
    %494 = vmatprep.subr.mxu0 0.0
    %495 = vmatpush2.msra.mxu0 0.0
    %496 = vmatprep.subr.mxu0 0.0
    %497 = vmatpush2.msra.mxu0 0.0
    %498 = vmatprep.subr.mxu0 0.0
    %499 = vmatpush2.msra.mxu0 0.0
    %500 = vmatprep.subr.mxu0 0.0
    %501 = vmatpush2.msra.mxu0 0.0
    %502 = vmatprep.subr.mxu0 0.0
    %503 = vmatpush2.msra.mxu0 0.0
    %504 = vmatprep.subr.mxu0 0.0
    %505 = vmatpush2.msra.mxu0 0.0
    %506 = vmatprep.subr.mxu0 0.0
    %507 = vmatpush2.msra.mxu0 0.0
    %508 = vmatprep.subr.mxu0 0.0
    %509 = vmatpush2.msra.mxu0 0.0
    %510 = vmatprep.subr.mxu0 0.0
    %511 = vmatpush2.msra.mxu0 0.0
    %512 = vmatprep.subr.mxu0 0.0
    %513 = vmatpush2.msra.mxu0 0.0
    %514 = vmatprep.subr.mxu0 0.0
    %515 = vmatpush2.msra.mxu0 0.0
    %516 = vmatprep.subr.mxu0 0.0
    %517 = vmatpush2.msra.mxu0 0.0
    %518 = vmatprep.subr.mxu0 0.0
    %519 = vmatpush2.msra.mxu0 0.0
    %520 = vmatprep.subr.mxu0 0.0
    %521 = vmatpush2.msra.mxu0 0.0
    %522 = vmatprep.subr.mxu0 0.0
    %523 = vmatpush2.msra.mxu0 0.0
    %524 = vmatprep.mubr.f32.mxu0 0.0
    %525 = vmatmul.mubr.f32.gmra.mxu0 %v458
    %v526 = vpop.f32.mrf.mxu0
    %v527 = vadd.f32 0.0, %v526
    %v528 = vpop.f32.mrf.mxu0
    %529 = vdwg.mxu0
    %v530 = vadd.f32 %v454, %v527
    %v531 = vxor.u32 %v530, 2147483648
    %v532 = vmul.f32 %v531, 1.442695
    %v533 = vpow.pop %v532
    %v534 = vadd.f32 %v533, 1.0
    %v535 = vrcp.pop %v534
    %v536 = vmul.f32 1.0, %v535
    %v537 = vtanh.pop %v530
    %v538 = vmul.f32 %v536, %v447
    %540 = vrot.lane.b32.xlu0 %v537, 64
    %v541 = vpop.permute.xlu0 %540
    %v543 = vmul.f32 %v536, %v541
    %545 = vrot.lane.b32.xlu0 %v543, 32
    %v546 = vpop.permute.xlu0 %545
    %v548 = vadd.f32 %v538, %v546
    %v549 = vtanh.pop %v548
    %551 = vrot.lane.b32.xlu0 %v549, 64
    %v552 = vpop.permute.xlu0 %551
    %v554 = vmul.f32 %v536, %v552
    %v555 = vld [vmem:[#allocation2 + $0x4] sm:$0x1]
    %557 = vrot.lane.b32.xlu0 %v554, 32
    %v558 = vpop.permute.xlu0 %557
    %v559 = vsel %vm153, %v558, 0
    %561 = vmatprep.subr.mxu0 0.0
    %562 = vmatpush1.msra.mxu0 0.0
    %563 = vmatprep.subr.mxu0 0.0
    %564 = vmatpush1.msra.mxu0 0.0
    %565 = vmatprep.subr.mxu0 0.0
    %566 = vmatpush1.msra.mxu0 0.0
    %567 = vmatprep.subr.mxu0 0.0
    %568 = vmatpush1.msra.mxu0 0.0
    %569 = vmatprep.subr.mxu0 0.0
    %570 = vmatpush1.msra.mxu0 0.0
    %571 = vmatprep.subr.mxu0 0.0
    %572 = vmatpush1.msra.mxu0 0.0
    %573 = vmatprep.subr.mxu0 0.0
    %574 = vmatpush1.msra.mxu0 0.0
    %575 = vmatprep.subr.mxu0 0.0
    %576 = vmatpush1.msra.mxu0 0.0
    %577 = vmatprep.subr.mxu0 0.0
    %578 = vmatpush1.msra.mxu0 0.0
    %579 = vmatprep.subr.mxu0 0.0
    %580 = vmatpush1.msra.mxu0 0.0
    %581 = vmatprep.subr.mxu0 0.0
    %582 = vmatpush1.msra.mxu0 0.0
    %583 = vmatprep.subr.mxu0 0.0
    %584 = vmatpush1.msra.mxu0 0.0
    %585 = vmatprep.subr.mxu0 0.0
    %586 = vmatpush1.msra.mxu0 %v151
    %587 = vmatprep.subr.mxu0 0.0
    %588 = vmatpush1.msra.mxu0 %v150
    %589 = vmatprep.subr.mxu0 0.0
    %590 = vmatpush1.msra.mxu0 %v149
    %591 = vmatprep.subr.mxu0 0.0
    %592 = vmatpush1.msra.mxu0 %v148
    %593 = vmatprep.subr.mxu0 0.0
    %594 = vmatpush2.msra.mxu0 0.0
    %595 = vmatprep.subr.mxu0 0.0
    %596 = vmatpush2.msra.mxu0 0.0
    %597 = vmatprep.subr.mxu0 0.0
    %598 = vmatpush2.msra.mxu0 0.0
    %599 = vmatprep.subr.mxu0 0.0
    %600 = vmatpush2.msra.mxu0 0.0
    %601 = vmatprep.subr.mxu0 0.0
    %602 = vmatpush2.msra.mxu0 0.0
    %603 = vmatprep.subr.mxu0 0.0
    %604 = vmatpush2.msra.mxu0 0.0
    %605 = vmatprep.subr.mxu0 0.0
    %606 = vmatpush2.msra.mxu0 0.0
    %607 = vmatprep.subr.mxu0 0.0
    %608 = vmatpush2.msra.mxu0 0.0
    %609 = vmatprep.subr.mxu0 0.0
    %610 = vmatpush2.msra.mxu0 0.0
    %611 = vmatprep.subr.mxu0 0.0
    %612 = vmatpush2.msra.mxu0 0.0
    %613 = vmatprep.subr.mxu0 0.0
    %614 = vmatpush2.msra.mxu0 0.0
    %615 = vmatprep.subr.mxu0 0.0
    %616 = vmatpush2.msra.mxu0 0.0
    %617 = vmatprep.subr.mxu0 0.0
    %618 = vmatpush2.msra.mxu0 0.0
    %619 = vmatprep.subr.mxu0 0.0
    %620 = vmatpush2.msra.mxu0 0.0
    %621 = vmatprep.subr.mxu0 0.0
    %622 = vmatpush2.msra.mxu0 0.0
    %623 = vmatprep.subr.mxu0 0.0
    %624 = vmatpush2.msra.mxu0 0.0
    %625 = vmatprep.mubr.f32.mxu0 0.0
    %626 = vmatmul.mubr.f32.gmra.mxu0 %v559
    %v627 = vpop.f32.mrf.mxu0
    %v628 = vadd.f32 0.0, %v627
    %v629 = vpop.f32.mrf.mxu0
    %630 = vdwg.mxu0
    %v631 = vadd.f32 %v555, %v628
    %v632 = vxor.u32 %v631, 2147483648
    %v633 = vmul.f32 %v632, 1.442695
    %v634 = vpow.pop %v633
    %v635 = vadd.f32 %v634, 1.0
    %v636 = vrcp.pop %v635
    %v637 = vmul.f32 1.0, %v636
    %v638 = vtanh.pop %v631
    %v639 = vmul.f32 %v637, %v548
    %641 = vrot.lane.b32.xlu0 %v638, 64
    %v642 = vpop.permute.xlu0 %641
    %v644 = vmul.f32 %v637, %v642
    %646 = vrot.lane.b32.xlu0 %v644, 32
    %v647 = vpop.permute.xlu0 %646
    %v649 = vadd.f32 %v639, %v647
    %v650 = vtanh.pop %v649
    %652 = vrot.lane.b32.xlu0 %v650, 64
    %v653 = vpop.permute.xlu0 %652
    %v655 = vmul.f32 %v637, %v653
    %v656 = vld [vmem:[#allocation2 + $0x5] sm:$0x1]
    %658 = vrot.lane.b32.xlu0 %v655, 32
    %v659 = vpop.permute.xlu0 %658
    %v660 = vsel %vm153, %v659, 0
    %662 = vmatprep.subr.mxu0 0.0
    %663 = vmatpush1.msra.mxu0 0.0
    %664 = vmatprep.subr.mxu0 0.0
    %665 = vmatpush1.msra.mxu0 0.0
    %666 = vmatprep.subr.mxu0 0.0
    %667 = vmatpush1.msra.mxu0 0.0
    %668 = vmatprep.subr.mxu0 0.0
    %669 = vmatpush1.msra.mxu0 0.0
    %670 = vmatprep.subr.mxu0 0.0
    %671 = vmatpush1.msra.mxu0 0.0
    %672 = vmatprep.subr.mxu0 0.0
    %673 = vmatpush1.msra.mxu0 0.0
    %674 = vmatprep.subr.mxu0 0.0
    %675 = vmatpush1.msra.mxu0 0.0
    %676 = vmatprep.subr.mxu0 0.0
    %677 = vmatpush1.msra.mxu0 0.0
    %678 = vmatprep.subr.mxu0 0.0
    %679 = vmatpush1.msra.mxu0 0.0
    %680 = vmatprep.subr.mxu0 0.0
    %681 = vmatpush1.msra.mxu0 0.0
    %682 = vmatprep.subr.mxu0 0.0
    %683 = vmatpush1.msra.mxu0 0.0
    %684 = vmatprep.subr.mxu0 0.0
    %685 = vmatpush1.msra.mxu0 0.0
    %686 = vmatprep.subr.mxu0 0.0
    %687 = vmatpush1.msra.mxu0 %v151
    %688 = vmatprep.subr.mxu0 0.0
    %689 = vmatpush1.msra.mxu0 %v150
    %690 = vmatprep.subr.mxu0 0.0
    %691 = vmatpush1.msra.mxu0 %v149
    %692 = vmatprep.subr.mxu0 0.0
    %693 = vmatpush1.msra.mxu0 %v148
    %694 = vmatprep.subr.mxu0 0.0
    %695 = vmatpush2.msra.mxu0 0.0
    %696 = vmatprep.subr.mxu0 0.0
    %697 = vmatpush2.msra.mxu0 0.0
    %698 = vmatprep.subr.mxu0 0.0
    %699 = vmatpush2.msra.mxu0 0.0
    %700 = vmatprep.subr.mxu0 0.0
    %701 = vmatpush2.msra.mxu0 0.0
    %702 = vmatprep.subr.mxu0 0.0
    %703 = vmatpush2.msra.mxu0 0.0
    %704 = vmatprep.subr.mxu0 0.0
    %705 = vmatpush2.msra.mxu0 0.0
    %706 = vmatprep.subr.mxu0 0.0
    %707 = vmatpush2.msra.mxu0 0.0
    %708 = vmatprep.subr.mxu0 0.0
    %709 = vmatpush2.msra.mxu0 0.0
    %710 = vmatprep.subr.mxu0 0.0
    %711 = vmatpush2.msra.mxu0 0.0
    %712 = vmatprep.subr.mxu0 0.0
    %713 = vmatpush2.msra.mxu0 0.0
    %714 = vmatprep.subr.mxu0 0.0
    %715 = vmatpush2.msra.mxu0 0.0
    %716 = vmatprep.subr.mxu0 0.0
    %717 = vmatpush2.msra.mxu0 0.0
    %718 = vmatprep.subr.mxu0 0.0
    %719 = vmatpush2.msra.mxu0 0.0
    %720 = vmatprep.subr.mxu0 0.0
    %721 = vmatpush2.msra.mxu0 0.0
    %722 = vmatprep.subr.mxu0 0.0
    %723 = vmatpush2.msra.mxu0 0.0
    %724 = vmatprep.subr.mxu0 0.0
    %725 = vmatpush2.msra.mxu0 0.0
    %726 = vmatprep.mubr.f32.mxu0 0.0
    %727 = vmatmul.mubr.f32.gmra.mxu0 %v660
    %v728 = vpop.f32.mrf.mxu0
    %v729 = vadd.f32 0.0, %v728
    %v730 = vpop.f32.mrf.mxu0
    %731 = vdwg.mxu0
    %v732 = vadd.f32 %v656, %v729
    %v733 = vxor.u32 %v732, 2147483648
    %v734 = vmul.f32 %v733, 1.442695
    %v735 = vpow.pop %v734
    %v736 = vadd.f32 %v735, 1.0
    %v737 = vrcp.pop %v736
    %v738 = vmul.f32 1.0, %v737
    %v739 = vtanh.pop %v732
    %v740 = vmul.f32 %v738, %v649
    %742 = vrot.lane.b32.xlu0 %v739, 64
    %v743 = vpop.permute.xlu0 %742
    %v745 = vmul.f32 %v738, %v743
    %747 = vrot.lane.b32.xlu0 %v745, 32
    %v748 = vpop.permute.xlu0 %747
    %v750 = vadd.f32 %v740, %v748
    %v751 = vtanh.pop %v750
    %753 = vrot.lane.b32.xlu0 %v751, 64
    %v754 = vpop.permute.xlu0 %753
    %v756 = vmul.f32 %v738, %v754
    %v757 = vld [vmem:[#allocation2 + $0x6] sm:$0x1]
    %759 = vrot.lane.b32.xlu0 %v756, 32
    %v760 = vpop.permute.xlu0 %759
    %v761 = vsel %vm153, %v760, 0
    %763 = vmatprep.subr.mxu0 0.0
    %764 = vmatpush1.msra.mxu0 0.0
    %765 = vmatprep.subr.mxu0 0.0
    %766 = vmatpush1.msra.mxu0 0.0
    %767 = vmatprep.subr.mxu0 0.0
    %768 = vmatpush1.msra.mxu0 0.0
    %769 = vmatprep.subr.mxu0 0.0
    %770 = vmatpush1.msra.mxu0 0.0
    %771 = vmatprep.subr.mxu0 0.0
    %772 = vmatpush1.msra.mxu0 0.0
    %773 = vmatprep.subr.mxu0 0.0
    %774 = vmatpush1.msra.mxu0 0.0
    %775 = vmatprep.subr.mxu0 0.0
    %776 = vmatpush1.msra.mxu0 0.0
    %777 = vmatprep.subr.mxu0 0.0
    %778 = vmatpush1.msra.mxu0 0.0
    %779 = vmatprep.subr.mxu0 0.0
    %780 = vmatpush1.msra.mxu0 0.0
    %781 = vmatprep.subr.mxu0 0.0
    %782 = vmatpush1.msra.mxu0 0.0
    %783 = vmatprep.subr.mxu0 0.0
    %784 = vmatpush1.msra.mxu0 0.0
    %785 = vmatprep.subr.mxu0 0.0
    %786 = vmatpush1.msra.mxu0 0.0
    %787 = vmatprep.subr.mxu0 0.0
    %788 = vmatpush1.msra.mxu0 %v151
    %789 = vmatprep.subr.mxu0 0.0
    %790 = vmatpush1.msra.mxu0 %v150
    %791 = vmatprep.subr.mxu0 0.0
    %792 = vmatpush1.msra.mxu0 %v149
    %793 = vmatprep.subr.mxu0 0.0
    %794 = vmatpush1.msra.mxu0 %v148
    %795 = vmatprep.subr.mxu0 0.0
    %796 = vmatpush2.msra.mxu0 0.0
    %797 = vmatprep.subr.mxu0 0.0
    %798 = vmatpush2.msra.mxu0 0.0
    %799 = vmatprep.subr.mxu0 0.0
    %800 = vmatpush2.msra.mxu0 0.0
    %801 = vmatprep.subr.mxu0 0.0
    %802 = vmatpush2.msra.mxu0 0.0
    %803 = vmatprep.subr.mxu0 0.0
    %804 = vmatpush2.msra.mxu0 0.0
    %805 = vmatprep.subr.mxu0 0.0
    %806 = vmatpush2.msra.mxu0 0.0
    %807 = vmatprep.subr.mxu0 0.0
    %808 = vmatpush2.msra.mxu0 0.0
    %809 = vmatprep.subr.mxu0 0.0
    %810 = vmatpush2.msra.mxu0 0.0
    %811 = vmatprep.subr.mxu0 0.0
    %812 = vmatpush2.msra.mxu0 0.0
    %813 = vmatprep.subr.mxu0 0.0
    %814 = vmatpush2.msra.mxu0 0.0
    %815 = vmatprep.subr.mxu0 0.0
    %816 = vmatpush2.msra.mxu0 0.0
    %817 = vmatprep.subr.mxu0 0.0
    %818 = vmatpush2.msra.mxu0 0.0
    %819 = vmatprep.subr.mxu0 0.0
    %820 = vmatpush2.msra.mxu0 0.0
    %821 = vmatprep.subr.mxu0 0.0
    %822 = vmatpush2.msra.mxu0 0.0
    %823 = vmatprep.subr.mxu0 0.0
    %824 = vmatpush2.msra.mxu0 0.0
    %825 = vmatprep.subr.mxu0 0.0
    %826 = vmatpush2.msra.mxu0 0.0
    %827 = vmatprep.mubr.f32.mxu0 0.0
    %828 = vmatmul.mubr.f32.gmra.mxu0 %v761
    %v829 = vpop.f32.mrf.mxu0
    %v830 = vadd.f32 0.0, %v829
    %v831 = vpop.f32.mrf.mxu0
    %832 = vdwg.mxu0
    %v833 = vadd.f32 %v757, %v830
    %v834 = vxor.u32 %v833, 2147483648
    %v835 = vmul.f32 %v834, 1.442695
    %v836 = vpow.pop %v835
    %v837 = vadd.f32 %v836, 1.0
    %v838 = vrcp.pop %v837
    %v839 = vmul.f32 1.0, %v838
    %v840 = vtanh.pop %v833
    %v841 = vmul.f32 %v839, %v750
    %843 = vrot.lane.b32.xlu0 %v840, 64
    %v844 = vpop.permute.xlu0 %843
    %v846 = vmul.f32 %v839, %v844
    %848 = vrot.lane.b32.xlu0 %v846, 32
    %v849 = vpop.permute.xlu0 %848
    %v851 = vadd.f32 %v841, %v849
    %v852 = vtanh.pop %v851
    %854 = vrot.lane.b32.xlu0 %v852, 64
    %v855 = vpop.permute.xlu0 %854
    %v857 = vmul.f32 %v839, %v855
    %v858 = vld [vmem:[#allocation2 + $0x7] sm:$0x1]
    %860 = vrot.lane.b32.xlu0 %v857, 32
    %v861 = vpop.permute.xlu0 %860
    %v862 = vsel %vm153, %v861, 0
    %864 = vmatprep.subr.mxu0 0.0
    %865 = vmatpush1.msra.mxu0 0.0
    %866 = vmatprep.subr.mxu0 0.0
    %867 = vmatpush1.msra.mxu0 0.0
    %868 = vmatprep.subr.mxu0 0.0
    %869 = vmatpush1.msra.mxu0 0.0
    %870 = vmatprep.subr.mxu0 0.0
    %871 = vmatpush1.msra.mxu0 0.0
    %872 = vmatprep.subr.mxu0 0.0
    %873 = vmatpush1.msra.mxu0 0.0
    %874 = vmatprep.subr.mxu0 0.0
    %875 = vmatpush1.msra.mxu0 0.0
    %876 = vmatprep.subr.mxu0 0.0
    %877 = vmatpush1.msra.mxu0 0.0
    %878 = vmatprep.subr.mxu0 0.0
    %879 = vmatpush1.msra.mxu0 0.0
    %880 = vmatprep.subr.mxu0 0.0
    %881 = vmatpush1.msra.mxu0 0.0
    %882 = vmatprep.subr.mxu0 0.0
    %883 = vmatpush1.msra.mxu0 0.0
    %884 = vmatprep.subr.mxu0 0.0
    %885 = vmatpush1.msra.mxu0 0.0
    %886 = vmatprep.subr.mxu0 0.0
    %887 = vmatpush1.msra.mxu0 0.0
    %888 = vmatprep.subr.mxu0 0.0
    %889 = vmatpush1.msra.mxu0 %v151
    %890 = vmatprep.subr.mxu0 0.0
    %891 = vmatpush1.msra.mxu0 %v150
    %892 = vmatprep.subr.mxu0 0.0
    %893 = vmatpush1.msra.mxu0 %v149
    %894 = vmatprep.subr.mxu0 0.0
    %895 = vmatpush1.msra.mxu0 %v148
    %896 = vmatprep.subr.mxu0 0.0
    %897 = vmatpush2.msra.mxu0 0.0
    %898 = vmatprep.subr.mxu0 0.0
    %899 = vmatpush2.msra.mxu0 0.0
    %900 = vmatprep.subr.mxu0 0.0
    %901 = vmatpush2.msra.mxu0 0.0
    %902 = vmatprep.subr.mxu0 0.0
    %903 = vmatpush2.msra.mxu0 0.0
    %904 = vmatprep.subr.mxu0 0.0
    %905 = vmatpush2.msra.mxu0 0.0
    %906 = vmatprep.subr.mxu0 0.0
    %907 = vmatpush2.msra.mxu0 0.0
    %908 = vmatprep.subr.mxu0 0.0
    %909 = vmatpush2.msra.mxu0 0.0
    %910 = vmatprep.subr.mxu0 0.0
    %911 = vmatpush2.msra.mxu0 0.0
    %912 = vmatprep.subr.mxu0 0.0
    %913 = vmatpush2.msra.mxu0 0.0
    %914 = vmatprep.subr.mxu0 0.0
    %915 = vmatpush2.msra.mxu0 0.0
    %916 = vmatprep.subr.mxu0 0.0
    %917 = vmatpush2.msra.mxu0 0.0
    %918 = vmatprep.subr.mxu0 0.0
    %919 = vmatpush2.msra.mxu0 0.0
    %920 = vmatprep.subr.mxu0 0.0
    %921 = vmatpush2.msra.mxu0 0.0
    %922 = vmatprep.subr.mxu0 0.0
    %923 = vmatpush2.msra.mxu0 0.0
    %924 = vmatprep.subr.mxu0 0.0
    %925 = vmatpush2.msra.mxu0 0.0
    %926 = vmatprep.subr.mxu0 0.0
    %927 = vmatpush2.msra.mxu0 0.0
    %928 = vmatprep.mubr.f32.mxu0 0.0
    %929 = vmatmul.mubr.f32.gmra.mxu0 %v862
    %v930 = vpop.f32.mrf.mxu0
    %v931 = vadd.f32 0.0, %v930
    %v932 = vpop.f32.mrf.mxu0
    %933 = vdwg.mxu0
    %v934 = vadd.f32 %v858, %v931
    %v935 = vxor.u32 %v934, 2147483648
    %v936 = vmul.f32 %v935, 1.442695
    %v937 = vpow.pop %v936
    %v938 = vadd.f32 %v937, 1.0
    %v939 = vrcp.pop %v938
    %v940 = vmul.f32 1.0, %v939
    %v941 = vtanh.pop %v934
    %v942 = vmul.f32 %v940, %v851
    %944 = vrot.lane.b32.xlu0 %v941, 64
    %v945 = vpop.permute.xlu0 %944
    %v947 = vmul.f32 %v940, %v945
    %949 = vrot.lane.b32.xlu0 %v947, 32
    %v950 = vpop.permute.xlu0 %949
    %v952 = vadd.f32 %v942, %v950
    %v953 = vtanh.pop %v952
    %955 = vrot.lane.b32.xlu0 %v953, 64
    %v956 = vpop.permute.xlu0 %955
    %v958 = vmul.f32 %v940, %v956
    %960 = vrot.lane.b32.xlu0 %v958, 32
    %v961 = vpop.permute.xlu0 %960
    %vm963 = vcmask 253952
    %964 = vst.msk [vmem:[#allocation9] sm:$0x1] %vm963, %v961
    // Predicated region
    $region30: #{tpu_custom_call.1} parent=1 // pred_check
      _
    $region31: #{tpu_custom_call.1} parent=1 // pred_check_branch
      %966 = sbr.rel (0) target = $region33
    $region32: #{tpu_custom_call.1} parent=1 // pred_region
      %s968 = ssub.s32 16, 16
      %969 = vsyncadd [#allocation5], %s968
      %s971 = sshll.u32 [#allocation9], 4
      %s972 = int_to_ptr.vmem [resolvable:$true] %s971
      %974 = dma.vmem_to_hbm [thread:$0]  %s972, 16, %s4, [#allocation5]
    $region33: #{tpu_custom_call.1} parent=1 // pred_fallthru
      _
    // Predicated region
    $region34: #{tpu_custom_call.1} parent=1 // pred_check
      _
    $region35: #{tpu_custom_call.1} parent=1 // pred_check_branch
      %976 = sbr.rel (0) target = $region37
    $region36: #{tpu_custom_call.1} parent=1 // pred_region
      %977 = dma.done [#allocation5], 16
    $region37: #{tpu_custom_call.1} parent=1 // pred_fallthru
      _
    %978 = vsyncpa [#allocation4], 1
    %979 = vsyncpa [#allocation7], 1
    %980 = vsyncpa [#allocation5], 1

</llo_original>
